<compile_context>
chip_gen: v7x
topology: tpu7x:2x2x1
jax: 0.10.0
libtpu: 0.0.40
codegen_flags: <defaults>
</compile_context>

<pallas_src>
import jax
import jax.numpy as jnp
from jax.experimental import pallas as pl
from jax.experimental.pallas import tpu as pltpu


def _round_up(x, m):
    return ((x + m - 1) // m) * m


def _pad_to(x, target_shape):
    pads = [(0, t - s) for s, t in zip(x.shape, target_shape)]
    return jnp.pad(x, pads)


def _gcn_stack_kernel(a_hbm_ref, h0_hbm_ref, w_ref, b_ref, o_ref,
                      a_vmem, h_vmem, dma_sems):
    """One grid step == one GCN layer.

    a_hbm_ref:  (Np, Np) bf16  normalized adjacency, raw HBM (memory_space=ANY)
    h0_hbm_ref: (Np, Dp) bf16  initial node features, raw HBM (memory_space=ANY)
    w_ref:      (1, Dp, Dp) bf16  this layer's weight (applied as H @ W)
    b_ref:      (1, 1, Dp)  f32   this layer's bias
    o_ref:      (Np, Dp)    f32   final output (written only on the last layer)
    a_vmem:     (Np, Np) bf16 VMEM scratch holding A_norm (filled at layer 0)
    h_vmem:     (Np, Dp) bf16 VMEM scratch holding the running activation H
    dma_sems:   (2,) DMA semaphores (0: A copy, 1: H0 copy)
    """
    layer = pl.program_id(0)
    last_layer = pl.num_programs(0) - 1

    @pl.when(layer == 0)
    def _():
        # Kick off the big A_norm copy (waited on only after H @ W below),
        # and bring H0 straight into the resident bf16 activation scratch.
        pltpu.make_async_copy(a_hbm_ref, a_vmem, dma_sems.at[0]).start()
        cp_h0 = pltpu.make_async_copy(h0_hbm_ref, h_vmem, dma_sems.at[1])
        cp_h0.start()
        cp_h0.wait()

    # H @ W  (bf16 x bf16 -> f32 accumulate on the MXU); does not need A, so on
    # layer 0 it overlaps the in-flight A_norm DMA.
    hw = jnp.dot(h_vmem[...], w_ref[0], preferred_element_type=jnp.float32)

    @pl.when(layer == 0)
    def _():
        pltpu.make_async_copy(a_hbm_ref, a_vmem, dma_sems.at[0]).wait()

    # A_norm @ (H W), then bias + ReLU in f32.
    agg = jnp.dot(a_vmem[...], hw.astype(jnp.bfloat16),
                  preferred_element_type=jnp.float32)
    h_new = jnp.maximum(agg + b_ref[0], 0.0)

    # Keep the running activation in bf16 (matmul input dtype anyway).
    h_vmem[...] = h_new.astype(jnp.bfloat16)

    @pl.when(layer == last_layer)
    def _():
        o_ref[...] = h_new


def risk_analyzer_forward(x, a_norm, weights, biases):
    """x: [N, D] f32, a_norm: [N, N] f32,
    weights: [L, D, D] (layer l applied as x @ weights[l]), biases: [L, 1, D]."""
    N, D = x.shape
    L = weights.shape[0]

    # Pad to lane-dense shapes (multiples of 128). Zero padding is exact:
    # padded A rows/cols are zero so padded nodes never leak into real nodes,
    # and padded feature columns stay identically zero through every layer.
    Np = _round_up(N, 128)
    Dp = _round_up(D, 128)

    a_p = _pad_to(a_norm, (Np, Np)).astype(jnp.bfloat16)
    h_p = _pad_to(x, (Np, Dp)).astype(jnp.bfloat16)
    w_p = _pad_to(weights, (L, Dp, Dp)).astype(jnp.bfloat16)
    b_p = _pad_to(biases, (L, 1, Dp)).astype(jnp.float32)

    # Explicit VMEM budget (bytes):
    needed = (
        Np * Np * 2              # A_norm bf16 scratch (single copy)
        + Np * Dp * 2            # resident H bf16 scratch
        + 2 * Dp * Dp * 2        # W_l bf16 (double buffered)
        + 2 * Dp * 4             # b_l f32 (double buffered)
        + Np * Dp * 4            # output f32 (resident, single buffer)
        + 2 * Np * Dp * 4        # f32 hw / agg temporaries
        + (6 << 20)              # Mosaic internal scratch + headroom
    )
    # Cap at the chip's physical VMEM (v5e/v6e: 128 MiB, v7x: 64 MiB per TC).
    try:
        phys_vmem = int(pltpu.get_tpu_info().vmem_capacity_bytes)
    except Exception:
        phys_vmem = 64 << 20     # conservative fallback (v7x per-TensorCore)
    vmem_limit = int(min(max(needed, 32 << 20), phys_vmem - (2 << 20)))

    out_p = pl.pallas_call(
        _gcn_stack_kernel,
        out_shape=jax.ShapeDtypeStruct((Np, Dp), jnp.float32),
        grid_spec=pltpu.PrefetchScalarGridSpec(
            num_scalar_prefetch=0,
            grid=(L,),
            in_specs=[
                pl.BlockSpec(memory_space=pl.ANY),               # A_norm (HBM)
                pl.BlockSpec(memory_space=pl.ANY),               # H0     (HBM)
                pl.BlockSpec((1, Dp, Dp), lambda l: (l, 0, 0)),  # W_l
                pl.BlockSpec((1, 1, Dp), lambda l: (l, 0, 0)),   # b_l
            ],
            out_specs=pl.BlockSpec((Np, Dp), lambda l: (0, 0)),  # resident out
            scratch_shapes=[
                pltpu.VMEM((Np, Np), jnp.bfloat16),              # A_norm
                pltpu.VMEM((Np, Dp), jnp.bfloat16),              # running H
                pltpu.SemaphoreType.DMA((2,)),                   # A / H0 sems
            ],
        ),
        compiler_params=pltpu.CompilerParams(
            dimension_semantics=("arbitrary",),   # layers are sequential
            vmem_limit_bytes=vmem_limit,
        ),
    )(a_p, h_p, w_p, b_p)

    return out_p[:N, :D]


def build_normalized_adjacency(edge_index, num_nodes):
    """Dense  D^{-1/2} (A + I) D^{-1/2}  from a [2, E] edge_index (plain JAX glue).

    Note: add_*remaining*_self_loops semantics (no doubling of existing
    self loops); duplicate edges are deduplicated (.set) rather than summed.
    """
    src, dst = edge_index[0], edge_index[1]
    a = jnp.zeros((num_nodes, num_nodes), jnp.float32)
    # message flows src -> dst, aggregation at dst  =>  A[dst, src] = 1
    a = a.at[dst, src].set(1.0)
    a = jnp.maximum(a, jnp.eye(num_nodes, dtype=jnp.float32))
    deg = a.sum(axis=1)
    dinv = jnp.where(deg > 0, 1.0 / jnp.sqrt(deg), 0.0)
    return dinv[:, None] * a * dinv[None, :]


def reference_forward(x, a_norm, weights, biases):
    h = x
    for l in range(weights.shape[0]):
        h = jnp.maximum(a_norm @ (h @ weights[l]) + biases[l, 0], 0.0)
    return h


if __name__ == "__main__":
    num_layers = 2
    hidden_dim = 32
    num_nodes = 16

    key = jax.random.PRNGKey(0)
    kx, kw, kb = jax.random.split(key, 3)

    # Node features [N, D]
    x = jax.random.normal(kx, (num_nodes, hidden_dim), dtype=jnp.float32)

    # Deterministic small undirected ring graph: edge_index [2, E]
    idx = jnp.arange(num_nodes)
    nxt = (idx + 1) % num_nodes
    src = jnp.concatenate([idx, nxt])
    dst = jnp.concatenate([nxt, idx])
    edge_index = jnp.stack([src, dst]).astype(jnp.int32)   # [2, 2*N]

    a_norm = build_normalized_adjacency(edge_index, num_nodes)

    # Deterministic glorot-style weight init (stacked per layer),
    # stored so that the kernel computes H @ W  (== PyG Linear with W^T).
    scale = jnp.sqrt(6.0 / (hidden_dim + hidden_dim))
    weights = scale * jax.random.uniform(
        kw, (num_layers, hidden_dim, hidden_dim), jnp.float32, -1.0, 1.0)
    biases = 0.01 * jax.random.normal(
        kb, (num_layers, 1, hidden_dim), jnp.float32)

    out = risk_analyzer_forward(x, a_norm, weights, biases)
    out = jax.block_until_ready(out)

    ref = reference_forward(x, a_norm, weights, biases)
    assert out.shape == (num_nodes, hidden_dim)
    # bf16 MXU operands (f32 accumulate) vs. pure f32 reference: loose tolerance.
    assert jnp.allclose(out, ref, atol=5e-2, rtol=5e-2)

    print("KERNEL_OK")
</pallas_src>

<mosaic_0001>
module attributes {stable_mosaic.version = 11 : i64} {
  func.func @_gcn_stack_kernel(%arg0: i32, %arg1: memref<128x128xbf16, #tpu.memory_space<any>>, %arg2: memref<128x128xbf16, #tpu.memory_space<any>>, %arg3: memref<1x128x128xbf16, #tpu.memory_space<vmem>>, %arg4: memref<1x1x128xf32, #tpu.memory_space<vmem>>, %arg5: memref<128x128xf32, #tpu.memory_space<vmem>>, %arg6: memref<128x128xbf16, #tpu.memory_space<vmem>>, %arg7: memref<128x128xbf16, #tpu.memory_space<vmem>>, %arg8: memref<2x!tpu.dma_semaphore, #tpu.memory_space<semaphore_mem>>) attributes {dimension_semantics = [#tpu.dimension_semantics<arbitrary>], iteration_bounds = array<i64: 2>, scalar_prefetch = 0 : i64, scratch_operands = 3 : i64, tpu.core_type = #tpu.core_type<tc>, window_params = [{}, {}, {transform_indices = @transform_2, window_bounds = array<i64: 1, 128, 128>}, {transform_indices = @transform_3, window_bounds = array<i64: 1, 1, 128>}, {pipeline_mode = #tpu.pipeline_mode<synchronous>, transform_indices = @transform_4, window_bounds = array<i64: 128, 128>}]} {
    %c0_i32 = arith.constant 0 : i32
    %0 = arith.cmpi eq, %arg0, %c0_i32 : i32
    %1 = arith.extui %0 : i1 to i32
    %c0_i32_0 = arith.constant 0 : i32
    %2 = arith.cmpi ne, %1, %c0_i32_0 : i32
    scf.if %2 {
      %c0_i32_17 = arith.constant 0 : i32
      %24 = tpu.memref_slice %arg8[%c0_i32_17] : memref<2x!tpu.dma_semaphore, #tpu.memory_space<semaphore_mem>> -> memref<1x!tpu.dma_semaphore, #tpu.memory_space<semaphore_mem>>
      %25 = tpu.memref_squeeze %24 : memref<1x!tpu.dma_semaphore, #tpu.memory_space<semaphore_mem>> -> memref<!tpu.dma_semaphore, #tpu.memory_space<semaphore_mem>>
      tpu.enqueue_dma source(%arg1 : memref<128x128xbf16, #tpu.memory_space<any>>) target(%arg6 : memref<128x128xbf16, #tpu.memory_space<vmem>>) target_semaphore(%25 : memref<!tpu.dma_semaphore, #tpu.memory_space<semaphore_mem>>)
      %c1_i32_18 = arith.constant 1 : i32
      %26 = tpu.memref_slice %arg8[%c1_i32_18] : memref<2x!tpu.dma_semaphore, #tpu.memory_space<semaphore_mem>> -> memref<1x!tpu.dma_semaphore, #tpu.memory_space<semaphore_mem>>
      %27 = tpu.memref_squeeze %26 : memref<1x!tpu.dma_semaphore, #tpu.memory_space<semaphore_mem>> -> memref<!tpu.dma_semaphore, #tpu.memory_space<semaphore_mem>>
      tpu.enqueue_dma source(%arg2 : memref<128x128xbf16, #tpu.memory_space<any>>) target(%arg7 : memref<128x128xbf16, #tpu.memory_space<vmem>>) target_semaphore(%27 : memref<!tpu.dma_semaphore, #tpu.memory_space<semaphore_mem>>)
      %c1_i32_19 = arith.constant 1 : i32
      %28 = tpu.memref_slice %arg8[%c1_i32_19] : memref<2x!tpu.dma_semaphore, #tpu.memory_space<semaphore_mem>> -> memref<1x!tpu.dma_semaphore, #tpu.memory_space<semaphore_mem>>
      %29 = tpu.memref_squeeze %28 : memref<1x!tpu.dma_semaphore, #tpu.memory_space<semaphore_mem>> -> memref<!tpu.dma_semaphore, #tpu.memory_space<semaphore_mem>>
      tpu.wait_dma2 semaphore(%29 : memref<!tpu.dma_semaphore, #tpu.memory_space<semaphore_mem>>) src(%arg2 : memref<128x128xbf16, #tpu.memory_space<any>>) dst(%arg7 : memref<128x128xbf16, #tpu.memory_space<vmem>>)
    } else {
    }
    %c0 = arith.constant 0 : index
    %c0_1 = arith.constant 0 : index
    %3 = vector.load %arg7[%c0, %c0_1] : memref<128x128xbf16, #tpu.memory_space<vmem>>, vector<128x128xbf16>
    %c0_2 = arith.constant 0 : index
    %c0_3 = arith.constant 0 : index
    %c0_4 = arith.constant 0 : index
    %4 = vector.load %arg3[%c0_2, %c0_3, %c0_4] : memref<1x128x128xbf16, #tpu.memory_space<vmem>>, vector<1x128x128xbf16>
    %5 = vector.shape_cast %4 : vector<1x128x128xbf16> to vector<128x128xbf16>
    %cst = arith.constant dense<0.000000e+00> : vector<128x128xf32>
    %6 = tpu.matmul %3, %5, %cst {dimension_numbers = #tpu.dot_dimension_numbers<[1], [0], [0], [1], [0, 0, 1, 1], [], []>} : vector<128x128xbf16>, vector<128x128xbf16>, vector<128x128xf32> -> vector<128x128xf32>
    %c0_i32_5 = arith.constant 0 : i32
    %7 = arith.cmpi eq, %arg0, %c0_i32_5 : i32
    %8 = arith.extui %7 : i1 to i32
    %c0_i32_6 = arith.constant 0 : i32
    %9 = arith.cmpi ne, %8, %c0_i32_6 : i32
    scf.if %9 {
      %c0_i32_17 = arith.constant 0 : i32
      %24 = tpu.memref_slice %arg8[%c0_i32_17] : memref<2x!tpu.dma_semaphore, #tpu.memory_space<semaphore_mem>> -> memref<1x!tpu.dma_semaphore, #tpu.memory_space<semaphore_mem>>
      %25 = tpu.memref_squeeze %24 : memref<1x!tpu.dma_semaphore, #tpu.memory_space<semaphore_mem>> -> memref<!tpu.dma_semaphore, #tpu.memory_space<semaphore_mem>>
      tpu.wait_dma2 semaphore(%25 : memref<!tpu.dma_semaphore, #tpu.memory_space<semaphore_mem>>) src(%arg1 : memref<128x128xbf16, #tpu.memory_space<any>>) dst(%arg6 : memref<128x128xbf16, #tpu.memory_space<vmem>>)
    } else {
    }
    %c0_7 = arith.constant 0 : index
    %c0_8 = arith.constant 0 : index
    %10 = vector.load %arg6[%c0_7, %c0_8] : memref<128x128xbf16, #tpu.memory_space<vmem>>, vector<128x128xbf16>
    %11 = arith.truncf %6 : vector<128x128xf32> to vector<128x128xbf16>
    %cst_9 = arith.constant dense<0.000000e+00> : vector<128x128xf32>
    %12 = tpu.matmul %10, %11, %cst_9 {dimension_numbers = #tpu.dot_dimension_numbers<[1], [0], [0], [1], [0, 0, 1, 1], [], []>} : vector<128x128xbf16>, vector<128x128xbf16>, vector<128x128xf32> -> vector<128x128xf32>
    %c0_10 = arith.constant 0 : index
    %c0_11 = arith.constant 0 : index
    %c0_12 = arith.constant 0 : index
    %13 = vector.load %arg4[%c0_10, %c0_11, %c0_12] : memref<1x1x128xf32, #tpu.memory_space<vmem>>, vector<1x1x128xf32>
    %14 = vector.shape_cast %13 : vector<1x1x128xf32> to vector<1x128xf32>
    %15 = vector.broadcast %14 : vector<1x128xf32> to vector<128x128xf32>
    %16 = arith.addf %12, %15 : vector<128x128xf32>
    %cst_13 = arith.constant 0.000000e+00 : f32
    %17 = vector.broadcast %cst_13 : f32 to vector<128x128xf32>
    %18 = arith.maximumf %16, %17 : vector<128x128xf32>
    %19 = arith.truncf %18 : vector<128x128xf32> to vector<128x128xbf16>
    %c0_14 = arith.constant 0 : index
    %c0_15 = arith.constant 0 : index
    %20 = vector.load %arg7[%c0_14, %c0_15] : memref<128x128xbf16, #tpu.memory_space<vmem>>, vector<128x128xbf16>
    tpu.vector_store %arg7[%c0_14, %c0_15], %19 {strides = array<i32>} : memref<128x128xbf16, #tpu.memory_space<vmem>>, vector<128x128xbf16>,
    %c1_i32 = arith.constant 1 : i32
    %21 = arith.cmpi eq, %arg0, %c1_i32 : i32
    %22 = arith.extui %21 : i1 to i32
    %c0_i32_16 = arith.constant 0 : i32
    %23 = arith.cmpi ne, %22, %c0_i32_16 : i32
    scf.if %23 {
      %c0_17 = arith.constant 0 : index
      %c0_18 = arith.constant 0 : index
      %24 = vector.load %arg5[%c0_17, %c0_18] : memref<128x128xf32, #tpu.memory_space<vmem>>, vector<128x128xf32>
      tpu.vector_store %arg5[%c0_17, %c0_18], %18 {strides = array<i32>} : memref<128x128xf32, #tpu.memory_space<vmem>>, vector<128x128xf32>,
    } else {
    }
    return
  }
  func.func @transform_2(%arg0: i32) -> (i32, i32, i32) {
    %c0_i32 = arith.constant 0 : i32
    %c0_i32_0 = arith.constant 0 : i32
    %c0_i32_1 = arith.constant 0 : i32
    return %arg0, %c0_i32, %c0_i32_0 : i32, i32, i32
  }
  func.func @transform_3(%arg0: i32) -> (i32, i32, i32) {
    %c0_i32 = arith.constant 0 : i32
    %c0_i32_0 = arith.constant 0 : i32
    %c0_i32_1 = arith.constant 0 : i32
    return %arg0, %c0_i32, %c0_i32_0 : i32, i32, i32
  }
  func.func @transform_4(%arg0: i32) -> (i32, i32) {
    %c0_i32 = arith.constant 0 : i32
    %c0_i32_0 = arith.constant 0 : i32
    %c0_i32_1 = arith.constant 0 : i32
    return %c0_i32, %c0_i32_0 : i32, i32
  }
}

</mosaic_0001>

<llo_original>
// kernel: tpu_custom_call.1
$region0: #{tpu_custom_call.1}
  #allocation0 [shape = 'u32[]', space=smem, size = 0x4, offset = 0x4, fixed_abs, tag = 'smem constant byte address 0x4 - core index']
  #allocation1 [shape = 'u32[144,128]{1,0:T(1,128)}', space=vmem, size = 0x12000, scoped, tag = 'internal scratch']
  #allocation2 [shape = 'bf16[128,128]{1,0:T(16,128)(2,1)}', space=vmem, size = 0x8000, scoped, tag = 'scratch operand']
  #allocation3 [shape = 'bf16[128,128]{1,0:T(16,128)(2,1)}', space=vmem, size = 0x8000, scoped, tag = 'scratch operand']
  #allocation4 [shape = 's32[2]{0}', space=sflag, size = 0x8, scoped, tag = 'scratch operand']
  #allocation9 [shape = 's32[]', space=sflag, size = 0x4, offset = 0, fixed_abs, tag = 'sflag constant byte address 0x0 - dummy sync flag']
  #allocation10 [shape = 's32[]', space=sflag, size = 0x4, offset = 0, fixed_abs, tag = 'sflag constant byte address 0x0 - dummy sync flag']
  #allocation11 [shape = 'u32[]', space=smem, size = 0x4, offset = 0x44, fixed_abs, tag = 'smem constant byte address 0x44 - assertion arg 0']
  #allocation12 [shape = 'u32[]', space=smem, size = 0x4, offset = 0x48, fixed_abs, tag = 'smem constant byte address 0x48 - assertion arg 1']
  #allocation13 [shape = 's32[]', space=sflag, size = 0x4, offset = 0, fixed_abs, tag = 'sflag constant byte address 0x0 - dummy sync flag']
  #allocation14 [shape = 's32[]', space=sflag, size = 0x4, offset = 0, fixed_abs, tag = 'sflag constant byte address 0x0 - dummy sync flag']
  %s0 = inlined_call_operand.hbm [shape: bf16[128,128], index: 0, kind: input, shape index: {}]
  %s1 = inlined_call_operand.hbm [shape: bf16[128,128], index: 1, kind: input, shape index: {}]
  %s2 = inlined_call_operand.hbm [shape: bf16[2,128,128], index: 2, kind: input, shape index: {}]
  %s3 = inlined_call_operand.vmem [shape: f32[2,1,128], index: 3, kind: input, shape index: {}]
  %s4 = inlined_call_operand.hbm [shape: f32[128,128], index: 4, kind: output, shape index: {}]
  %s5 = sld [smem:[#allocation0]]
  $region65: #{tpu_custom_call.1} parent=0
    _
  %s7 = ssub.s32 1, %s5
  %s8 = scalar_select 0, %s7, %s5
  $region1: #{tpu_custom_call.1} parent=0
    #allocation5 [shape = 'u8[65536]{0}', space=vmem, size = 0x10000, scoped, tag = 'input window, operand 2']
    #allocation6 [shape = 's32[2]{0}', space=sflag, size = 0x8, scoped, tag = 'scoped memory for tpu_custom_call.1']
    #allocation7 [shape = 's32[2]{0}', space=sflag, size = 0x8, scoped, tag = 'scoped memory for tpu_custom_call.1']
    #allocation8 [shape = 'u8[65536]{0}', space=vmem, size = 0x10000, scoped, tag = 'output window, operand 0, single buffered']
    %9 = vsyncpa [#allocation6], 0
    %s10 = scalar_lea.sflag [#allocation6], 1
    %11 = vsyncpa %s10, 0
    %12 = vsyncpa [#allocation7], 0
    loop: start=0, step=1, limit=4
    $region2: #{tpu_custom_call.1} parent=1 // loop_pre_header
      _
    $region3: #{tpu_custom_call.1} parent=1 // loop_header
      %s14 = sphi 0, %s18
      %p15 = scmp.ge.s32.totalorder %s14, 4
      %s24 = sphi 0, %s26
      %s27 = sphi 0, %s24
      %s28 = sphi 0, %s27
      %s44 = sphi 0, %s28
      %s50 = sphi 0, %s52
      %s53 = sphi 0, %s50
      %s54 = sphi 0, %s53
      %s70 = sphi 0, %s54
      %s74 = sphi 0, %s74
      %s76 = sphi 0, %s74
      %s77 = sphi 0, %s76
      %s91 = sphi 0, %s77
    $region4: #{tpu_custom_call.1} parent=1 // loop_header_branch
      %17 = sbr.rel (%p15) target = $region8
    $region5: #{tpu_custom_call.1} parent=1 // loop_body
      %s19 = ssub.s32 %s14, 1
      %s20 = ssub.s32 %s14, 2
      %s21 = sadd.s32 %s14, 1
      %s22 = ssub.s32 %s14, %s21
      %p23 = scmp.eq.s32.totalorder %s22, 0
      %s25 = sadd.s32 %s24, 1
      %s26 = scalar_select %p23, %s24, %s25
      %p29 = pneg %p23
      %p30 = scmp.eq.s32.totalorder %s14, 1
      %p31 = por %p29, %p30
      %p32 = scmp.ne.s32.totalorder %s24, %s27
      %p33 = scmp.eq.s32.totalorder %s14, 0
      %p34 = por %p32, %p33
      %p35 = scmp.ne.s32.totalorder %s24, %s27
      %p36 = scmp.eq.s32.totalorder %s19, 1
      %p37 = por %p35, %p36
      %p38 = scmp.ne.s32.totalorder %s27, %s28
      %p39 = scmp.eq.s32.totalorder %s19, 0
      %p40 = por %p38, %p39
      %p41 = scmp.ne.s32.totalorder %s27, %s28
      %p42 = scmp.eq.s32.totalorder %s20, 1
      %p43 = por %p41, %p42
      %p45 = scmp.ne.s32.totalorder %s28, %s44
      %p46 = scmp.eq.s32.totalorder %s20, 0
      %p47 = por %p45, %p46
      %s48 = ssub.s32 %s14, %s21
      %p49 = scmp.eq.s32.totalorder %s48, 0
      %s51 = sadd.s32 %s50, 1
      %s52 = scalar_select %p49, %s50, %s51
      %p55 = pneg %p49
      %p56 = scmp.eq.s32.totalorder %s14, 1
      %p57 = por %p55, %p56
      %p58 = scmp.ne.s32.totalorder %s50, %s53
      %p59 = scmp.eq.s32.totalorder %s14, 0
      %p60 = por %p58, %p59
      %p61 = scmp.ne.s32.totalorder %s50, %s53
      %p62 = scmp.eq.s32.totalorder %s19, 1
      %p63 = por %p61, %p62
      %p64 = scmp.ne.s32.totalorder %s53, %s54
      %p65 = scmp.eq.s32.totalorder %s19, 0
      %p66 = por %p64, %p65
      %p67 = scmp.ne.s32.totalorder %s53, %s54
      %p68 = scmp.eq.s32.totalorder %s20, 1
      %p69 = por %p67, %p68
      %p71 = scmp.ne.s32.totalorder %s54, %s70
      %p72 = scmp.eq.s32.totalorder %s20, 0
      %p73 = por %p71, %p72
      %s75 = sadd.s32 %s74, 1
      %p78 = scmp.eq.s32.totalorder %s14, 1
      %p79 = scmp.ne.s32.totalorder %s74, %s76
      %p80 = scmp.eq.s32.totalorder %s14, 0
      %p81 = por %p79, %p80
      %p82 = scmp.ne.s32.totalorder %s74, %s76
      %p83 = scmp.eq.s32.totalorder %s19, 1
      %p84 = por %p82, %p83
      %p85 = scmp.ne.s32.totalorder %s76, %s77
      %p86 = scmp.eq.s32.totalorder %s19, 0
      %p87 = por %p85, %p86
      %p88 = scmp.ne.s32.totalorder %s76, %s77
      %p89 = scmp.eq.s32.totalorder %s20, 1
      %p90 = por %p88, %p89
      %p92 = scmp.ne.s32.totalorder %s77, %s91
      %p93 = scmp.eq.s32.totalorder %s20, 0
      %p94 = por %p92, %p93
      %p95 = scmp.le.s32.totalorder 1, %s14
      %p96 = scmp.lt.s32.totalorder %s14, 3
      %p97 = pnand %p95, %p96
      %p98 = pneg %p97
      // Predicated region
      $region9: #{tpu_custom_call.1} parent=5 // pred_check
        _
      $region10: #{tpu_custom_call.1} parent=5 // pred_check_branch
        %100 = sbr.rel (%p97) target = $region12
      $region11: #{tpu_custom_call.1} parent=5 // pred_region
        %s101 = ssub.s32 %s14, 1
      $region12: #{tpu_custom_call.1} parent=5 // pred_fallthru
        _
      %p102 = scmp.lt.s32.totalorder %s14, 2
      // Predicated region
      $region13: #{tpu_custom_call.1} parent=5 // pred_check
        %p103 = pneg %p102
      $region14: #{tpu_custom_call.1} parent=5 // pred_check_branch
        %105 = sbr.rel (%p103) target = $region16
      $region15: #{tpu_custom_call.1} parent=5 // pred_region
        // Predicated region
        $region17: #{tpu_custom_call.1} parent=15 // pred_check
          %p106 = pneg %p34
        $region18: #{tpu_custom_call.1} parent=15 // pred_check_branch
          %108 = sbr.rel (%p106) target = $region20
        $region19: #{tpu_custom_call.1} parent=15 // pred_region
          %s109 = sand.u32 %s24, 1
          %s110 = scalar_lea.sflag [#allocation6], %s109
          %s111 = sand.u32 %s24, 1
          %s112 = smul.addr %s111, 64
          %s113 = scalar_lea.vmem [#allocation5], %s112
          %s115 = ssub.s32 1024, 1024
          %116 = vsyncadd %s110, %s115
          %s117 = smul.addr %s14, 16
          %s118 = smul.addr %s117, 64
          %s119 = scalar_lea.hbm %s2, %s118
          %s120 = sshll.u32 %s113, 4
          %s121 = int_to_ptr.vmem [resolvable:$true] %s120
          %126 = dma.hbm_to_vmem [thread:$0]  %s119, 1024, %s121, %s110, 64, 64, 4
        $region20: #{tpu_custom_call.1} parent=15 // pred_fallthru
          _
        // Predicated region
        $region21: #{tpu_custom_call.1} parent=15 // pred_check
          %p127 = pneg %p60
        $region22: #{tpu_custom_call.1} parent=15 // pred_check_branch
          %129 = sbr.rel (%p127) target = $region24
        $region23: #{tpu_custom_call.1} parent=15 // pred_region
          %p130 = scmp.lt.s32.totalorder %s14, 1
          %s131 = scalar_select %p130, %s14, 1
          %s132 = scalar_lea.vmem %s3, %s131
        $region24: #{tpu_custom_call.1} parent=15 // pred_fallthru
          _
      $region16: #{tpu_custom_call.1} parent=5 // pred_fallthru
        _
      %p133 = scmp.le.s32.totalorder 1, %s14
      %p134 = scmp.lt.s32.totalorder %s14, 3
      %p135 = pnand %p133, %p134
      %p136 = pneg %p135
      // Predicated region
      $region25: #{tpu_custom_call.1} parent=5 // pred_check
        _
      $region26: #{tpu_custom_call.1} parent=5 // pred_check_branch
        %138 = sbr.rel (%p135) target = $region28
      $region27: #{tpu_custom_call.1} parent=5 // pred_region
        %s139 = ssub.s32 %s14, 1
        %s140 = sand.u32 %s27, 1
        %s141 = scalar_lea.sflag [#allocation6], %s140
        %s142 = sand.u32 %s27, 1
        %s143 = smul.addr %s142, 64
        %s144 = scalar_lea.vmem [#allocation5], %s143
        // Predicated region
        $region29: #{tpu_custom_call.1} parent=27 // pred_check
          %p145 = pneg %p40
        $region30: #{tpu_custom_call.1} parent=27 // pred_check_branch
          %147 = sbr.rel (%p145) target = $region32
        $region31: #{tpu_custom_call.1} parent=27 // pred_region
          %148 = dma.done %s141, 1024
        $region32: #{tpu_custom_call.1} parent=27 // pred_fallthru
          _
        %s149 = sand.u32 %s27, 1
        %s150 = scalar_lea.sflag [#allocation6], %s149
        %s151 = sand.u32 %s27, 1
        %s152 = smul.addr %s151, 64
        %s153 = scalar_lea.vmem [#allocation5], %s152
        %p154 = pneg %p40
        %p155 = pneg %p37
        %p156 = scmp.lt.s32.totalorder %s19, 1
        %s157 = scalar_select %p156, %s19, 1
        %s158 = scalar_lea.vmem %s3, %s157
        %p159 = pneg %p66
        %p160 = pneg %p63
        %p161 = pneg %p87
        %p162 = pneg %p84
        %p163 = scmp.lt.s32.totalorder %s19, 1
        %s164 = scalar_select %p163, %s19, 1
        %s165 = scalar_lea.vmem %s3, %s164
        %p167 = scmp.eq.s32.totalorder %s19, 0
        // Predicated region
        $region33: #{tpu_custom_call.1} parent=27 // pred_check
          %p168 = pneg %p167
        $region34: #{tpu_custom_call.1} parent=27 // pred_check_branch
          %170 = sbr.rel (%p168) target = $region36
        $region35: #{tpu_custom_call.1} parent=27 // pred_region
          // Predicated region
          $region37: #{tpu_custom_call.1} parent=35 // pred_check
            _
          $region38: #{tpu_custom_call.1} parent=35 // pred_check_branch
            %172 = sbr.rel target = $region40
          $region39: #{tpu_custom_call.1} parent=35 // pred_region
            %173 = sst [smem:[#allocation11]] [#allocation10]
            %174 = sst [smem:[#allocation12]] [#allocation9]
          $region40: #{tpu_custom_call.1} parent=35 // pred_fallthru
            _
          %176 = shalt.err (0)
          %s178 = sshll.u32 [#allocation2], 4
          %s179 = int_to_ptr.vmem [resolvable:$true] %s178
          %181 = dma.hbm_to_vmem [thread:$0]  %s0, 1024, %s179, [#allocation4]
          %s182 = scalar_lea.sflag [#allocation4], 1
          // Predicated region
          $region41: #{tpu_custom_call.1} parent=35 // pred_check
            _
          $region42: #{tpu_custom_call.1} parent=35 // pred_check_branch
            %184 = sbr.rel target = $region44
          $region43: #{tpu_custom_call.1} parent=35 // pred_region
            %185 = sst [smem:[#allocation11]] [#allocation14]
            %186 = sst [smem:[#allocation12]] [#allocation13]
          $region44: #{tpu_custom_call.1} parent=35 // pred_fallthru
            _
          %188 = shalt.err (0)
          %s190 = sshll.u32 [#allocation3], 4
          %s191 = int_to_ptr.vmem [resolvable:$true] %s190
          %193 = dma.hbm_to_vmem [thread:$0]  %s1, 1024, %s191, %s182
          %s194 = smul.u32 4, 16
          %s195 = smul.u32 %s194, 1
          %s196 = sshll.u32 %s195, 4
          %197 = dma.done %s182, %s196
        $region36: #{tpu_custom_call.1} parent=27 // pred_fallthru
          _
        %v198 = vld [vmem:[#allocation3] sm:$0xff]
        %v199 = vld [vmem:[#allocation3 + $0x8] sm:$0xff]
        %v200 = vld [vmem:[#allocation3 + $0x10] sm:$0xff]
        %v201 = vld [vmem:[#allocation3 + $0x18] sm:$0xff]
        %v202 = vld [vmem:[#allocation3 + $0x20] sm:$0xff]
        %v203 = vld [vmem:[#allocation3 + $0x28] sm:$0xff]
        %v204 = vld [vmem:[#allocation3 + $0x30] sm:$0xff]
        %v205 = vld [vmem:[#allocation3 + $0x38] sm:$0xff]
        %v206 = vld [vmem:[%s144] sm:$0xf]
        %v207 = vld [vmem:[%s144 + $0x4] sm:$0xf]
        %v208 = vld [vmem:[%s144 + $0x8] sm:$0xf]
        %v209 = vld [vmem:[%s144 + $0xc] sm:$0xf]
        %v210 = vld [vmem:[%s144 + $0x10] sm:$0xf]
        %v211 = vld [vmem:[%s144 + $0x14] sm:$0xf]
        %v212 = vld [vmem:[%s144 + $0x18] sm:$0xf]
        %v213 = vld [vmem:[%s144 + $0x1c] sm:$0xf]
        %v214 = vld [vmem:[%s144 + $0x20] sm:$0xf]
        %v215 = vld [vmem:[%s144 + $0x24] sm:$0xf]
        %v216 = vld [vmem:[%s144 + $0x28] sm:$0xf]
        %v217 = vld [vmem:[%s144 + $0x2c] sm:$0xf]
        %v218 = vld [vmem:[%s144 + $0x30] sm:$0xf]
        %v219 = vld [vmem:[%s144 + $0x34] sm:$0xf]
        %v220 = vld [vmem:[%s144 + $0x38] sm:$0xf]
        %v221 = vld [vmem:[%s144 + $0x3c] sm:$0xf]
        %v238 = vunpack.c.l.b16 %v206
        %v239 = vunpack.c.l.b16 %v207
        %v240 = vunpack.c.l.b16 %v208
        %v241 = vunpack.c.l.b16 %v209
        %v242 = vunpack.c.l.b16 %v210
        %v243 = vunpack.c.l.b16 %v211
        %v244 = vunpack.c.l.b16 %v212
        %v245 = vunpack.c.l.b16 %v213
        %v246 = vunpack.c.l.b16 %v214
        %v247 = vunpack.c.l.b16 %v215
        %v248 = vunpack.c.l.b16 %v216
        %v249 = vunpack.c.l.b16 %v217
        %v250 = vunpack.c.l.b16 %v218
        %v251 = vunpack.c.l.b16 %v219
        %v252 = vunpack.c.l.b16 %v220
        %v253 = vunpack.c.l.b16 %v221
        %v254 = vpack.c.b16 %v239, %v238
        %v255 = vpack.c.b16 %v241, %v240
        %v256 = vpack.c.b16 %v243, %v242
        %v257 = vpack.c.b16 %v245, %v244
        %v258 = vpack.c.b16 %v247, %v246
        %v259 = vpack.c.b16 %v249, %v248
        %v260 = vpack.c.b16 %v251, %v250
        %v261 = vpack.c.b16 %v253, %v252
        %270 = vmatprep.subr.bf16.mxu0 0
        %271 = vmatpush1.bf16.msra.mxu0 %v254
        %272 = vmatprep.subr.bf16.mxu0 0
        %273 = vmatpush1.bf16.msra.mxu0 %v255
        %274 = vmatprep.subr.bf16.mxu0 0
        %275 = vmatpush1.bf16.msra.mxu0 %v256
        %276 = vmatprep.subr.bf16.mxu0 0
        %277 = vmatpush1.bf16.msra.mxu0 %v257
        %278 = vmatprep.subr.bf16.mxu0 0
        %279 = vmatpush1.bf16.msra.mxu0 %v258
        %280 = vmatprep.subr.bf16.mxu0 0
        %281 = vmatpush1.bf16.msra.mxu0 %v259
        %282 = vmatprep.subr.bf16.mxu0 0
        %283 = vmatpush1.bf16.msra.mxu0 %v260
        %284 = vmatprep.subr.bf16.mxu0 0
        %285 = vmatpush1.bf16.msra.mxu0 %v261
        %286 = vmatprep.subr.bf16.mxu0 0
        %287 = vmatpush1.bf16.msra.mxu0 0
        %288 = vmatprep.subr.bf16.mxu0 0
        %289 = vmatpush1.bf16.msra.mxu0 0
        %290 = vmatprep.subr.bf16.mxu0 0
        %291 = vmatpush1.bf16.msra.mxu0 0
        %292 = vmatprep.subr.bf16.mxu0 0
        %293 = vmatpush1.bf16.msra.mxu0 0
        %294 = vmatprep.subr.bf16.mxu0 0
        %295 = vmatpush1.bf16.msra.mxu0 0
        %296 = vmatprep.subr.bf16.mxu0 0
        %297 = vmatpush1.bf16.msra.mxu0 0
        %298 = vmatprep.subr.bf16.mxu0 0
        %299 = vmatpush1.bf16.msra.mxu0 0
        %300 = vmatprep.subr.bf16.mxu0 0
        %301 = vmatpush1.bf16.msra.mxu0 0
        %302 = vmatprep.mubr.bf16.mxu0 0
        %303 = vmatmul.mubr.bf16.gmra.mrb[0].mxu0 %v198
        %v304 = vpop.f32.mrb[0].mxu0
        %v305 = vadd.f32 0.0, %v304
        %v306 = vpop.f32.mrb[0].mxu0
        %v307 = vpop.f32.mrb[0].mxu0
        %v308 = vadd.f32 0.0, %v307
        %v309 = vpop.f32.mrb[0].mxu0
        %310 = vmatprep.mubr.bf16.mxu0 0
        %311 = vmatmul.mubr.bf16.gmra.mrb[0].mxu0 %v199
        %v312 = vpop.f32.mrb[0].mxu0
        %v313 = vadd.f32 0.0, %v312
        %v314 = vpop.f32.mrb[0].mxu0
        %v315 = vpop.f32.mrb[0].mxu0
        %v316 = vadd.f32 0.0, %v315
        %v317 = vpop.f32.mrb[0].mxu0
        %318 = vmatprep.mubr.bf16.mxu0 0
        %319 = vmatmul.mubr.bf16.gmra.mrb[0].mxu0 %v200
        %v320 = vpop.f32.mrb[0].mxu0
        %v321 = vadd.f32 0.0, %v320
        %v322 = vpop.f32.mrb[0].mxu0
        %v323 = vpop.f32.mrb[0].mxu0
        %v324 = vadd.f32 0.0, %v323
        %v325 = vpop.f32.mrb[0].mxu0
        %326 = vmatprep.mubr.bf16.mxu0 0
        %327 = vmatmul.mubr.bf16.gmra.mrb[0].mxu0 %v201
        %v328 = vpop.f32.mrb[0].mxu0
        %v329 = vadd.f32 0.0, %v328
        %v330 = vpop.f32.mrb[0].mxu0
        %v331 = vpop.f32.mrb[0].mxu0
        %v332 = vadd.f32 0.0, %v331
        %v333 = vpop.f32.mrb[0].mxu0
        %334 = vmatprep.mubr.bf16.mxu0 0
        %335 = vmatmul.mubr.bf16.gmra.mrb[0].mxu0 %v202
        %v336 = vpop.f32.mrb[0].mxu0
        %v337 = vadd.f32 0.0, %v336
        %v338 = vpop.f32.mrb[0].mxu0
        %v339 = vpop.f32.mrb[0].mxu0
        %v340 = vadd.f32 0.0, %v339
        %v341 = vpop.f32.mrb[0].mxu0
        %342 = vmatprep.mubr.bf16.mxu0 0
        %343 = vmatmul.mubr.bf16.gmra.mrb[0].mxu0 %v203
        %v344 = vpop.f32.mrb[0].mxu0
        %v345 = vadd.f32 0.0, %v344
        %v346 = vpop.f32.mrb[0].mxu0
        %v347 = vpop.f32.mrb[0].mxu0
        %v348 = vadd.f32 0.0, %v347
        %v349 = vpop.f32.mrb[0].mxu0
        %350 = vmatprep.mubr.bf16.mxu0 0
        %351 = vmatmul.mubr.bf16.gmra.mrb[0].mxu0 %v204
        %v352 = vpop.f32.mrb[0].mxu0
        %v353 = vadd.f32 0.0, %v352
        %v354 = vpop.f32.mrb[0].mxu0
        %v355 = vpop.f32.mrb[0].mxu0
        %v356 = vadd.f32 0.0, %v355
        %v357 = vpop.f32.mrb[0].mxu0
        %358 = vmatprep.mubr.bf16.mxu0 0
        %359 = vmatmul.mubr.bf16.gmra.mrb[0].mxu0 %v205
        %v360 = vpop.f32.mrb[0].mxu0
        %v361 = vadd.f32 0.0, %v360
        %v362 = vpop.f32.mrb[0].mxu0
        %v363 = vpop.f32.mrb[0].mxu0
        %v364 = vadd.f32 0.0, %v363
        %v365 = vpop.f32.mrb[0].mxu0
        %366 = vdwg.mxu0
        // Predicated region
        $region45: #{tpu_custom_call.1} parent=27 // pred_check
          %p367 = pneg %p167
        $region46: #{tpu_custom_call.1} parent=27 // pred_check_branch
          %369 = sbr.rel (%p367) target = $region48
        $region47: #{tpu_custom_call.1} parent=27 // pred_region
          %s370 = smul.u32 4, 16
          %s371 = smul.u32 %s370, 1
          %s372 = sshll.u32 %s371, 4
          %373 = dma.done [#allocation4], %s372
        $region48: #{tpu_custom_call.1} parent=27 // pred_fallthru
          _
        %v374 = vld [vmem:[#allocation2] sm:$0xff]
        %v375 = vld [vmem:[#allocation2 + $0x8] sm:$0xff]
        %v376 = vld [vmem:[#allocation2 + $0x10] sm:$0xff]
        %v377 = vld [vmem:[#allocation2 + $0x18] sm:$0xff]
        %v378 = vld [vmem:[#allocation2 + $0x20] sm:$0xff]
        %v379 = vld [vmem:[#allocation2 + $0x28] sm:$0xff]
        %v380 = vld [vmem:[#allocation2 + $0x30] sm:$0xff]
        %v381 = vld [vmem:[#allocation2 + $0x38] sm:$0xff]
        %v382 = vpack.c.bf16 %v308, %v305
        %v383 = vpack.c.bf16 %v316, %v313
        %v384 = vpack.c.bf16 %v324, %v321
        %v385 = vpack.c.bf16 %v332, %v329
        %v386 = vpack.c.bf16 %v340, %v337
        %v387 = vpack.c.bf16 %v348, %v345
        %v388 = vpack.c.bf16 %v356, %v353
        %v389 = vpack.c.bf16 %v364, %v361
        %v390 = vld [vmem:[%s165] sm:$0x1]
        %v392 = vlaneseq
        %v393 = vshrl.u32 %v392, 7
        %v394 = vsub.s32 0, %v393
        %v395 = vrot.slane %v390, %v394
        %397 = vmatprep.subr.bf16.mxu0 0
        %398 = vmatpush1.bf16.msra.mxu0 %v382
        %399 = vmatprep.subr.bf16.mxu0 0
        %400 = vmatpush1.bf16.msra.mxu0 %v383
        %401 = vmatprep.subr.bf16.mxu0 0
        %402 = vmatpush1.bf16.msra.mxu0 %v384
        %403 = vmatprep.subr.bf16.mxu0 0
        %404 = vmatpush1.bf16.msra.mxu0 %v385
        %405 = vmatprep.subr.bf16.mxu0 0
        %406 = vmatpush1.bf16.msra.mxu0 %v386
        %407 = vmatprep.subr.bf16.mxu0 0
        %408 = vmatpush1.bf16.msra.mxu0 %v387
        %409 = vmatprep.subr.bf16.mxu0 0
        %410 = vmatpush1.bf16.msra.mxu0 %v388
        %411 = vmatprep.subr.bf16.mxu0 0
        %412 = vmatpush1.bf16.msra.mxu0 %v389
        %413 = vmatprep.subr.bf16.mxu0 0
        %414 = vmatpush1.bf16.msra.mxu0 0
        %415 = vmatprep.subr.bf16.mxu0 0
        %416 = vmatpush1.bf16.msra.mxu0 0
        %417 = vmatprep.subr.bf16.mxu0 0
        %418 = vmatpush1.bf16.msra.mxu0 0
        %419 = vmatprep.subr.bf16.mxu0 0
        %420 = vmatpush1.bf16.msra.mxu0 0
        %421 = vmatprep.subr.bf16.mxu0 0
        %422 = vmatpush1.bf16.msra.mxu0 0
        %423 = vmatprep.subr.bf16.mxu0 0
        %424 = vmatpush1.bf16.msra.mxu0 0
        %425 = vmatprep.subr.bf16.mxu0 0
        %426 = vmatpush1.bf16.msra.mxu0 0
        %427 = vmatprep.subr.bf16.mxu0 0
        %428 = vmatpush1.bf16.msra.mxu0 0
        %429 = vmatprep.mubr.bf16.mxu0 0
        %430 = vmatmul.mubr.bf16.gmra.mrb[0].mxu0 %v374
        %v431 = vpop.f32.mrb[0].mxu0
        %v432 = vadd.f32 %v395, %v431
        %v433 = vpop.f32.mrb[0].mxu0
        %v434 = vpop.f32.mrb[0].mxu0
        %v435 = vadd.f32 %v395, %v434
        %v436 = vpop.f32.mrb[0].mxu0
        %437 = vmatprep.mubr.bf16.mxu0 0
        %438 = vmatmul.mubr.bf16.gmra.mrb[0].mxu0 %v375
        %v439 = vpop.f32.mrb[0].mxu0
        %v440 = vadd.f32 %v395, %v439
        %v441 = vpop.f32.mrb[0].mxu0
        %v442 = vpop.f32.mrb[0].mxu0
        %v443 = vadd.f32 %v395, %v442
        %v444 = vpop.f32.mrb[0].mxu0
        %445 = vmatprep.mubr.bf16.mxu0 0
        %446 = vmatmul.mubr.bf16.gmra.mrb[0].mxu0 %v376
        %v447 = vpop.f32.mrb[0].mxu0
        %v448 = vadd.f32 %v395, %v447
        %v449 = vpop.f32.mrb[0].mxu0
        %v450 = vpop.f32.mrb[0].mxu0
        %v451 = vadd.f32 %v395, %v450
        %v452 = vpop.f32.mrb[0].mxu0
        %453 = vmatprep.mubr.bf16.mxu0 0
        %454 = vmatmul.mubr.bf16.gmra.mrb[0].mxu0 %v377
        %v455 = vpop.f32.mrb[0].mxu0
        %v456 = vadd.f32 %v395, %v455
        %v457 = vpop.f32.mrb[0].mxu0
        %v458 = vpop.f32.mrb[0].mxu0
        %v459 = vadd.f32 %v395, %v458
        %v460 = vpop.f32.mrb[0].mxu0
        %461 = vmatprep.mubr.bf16.mxu0 0
        %462 = vmatmul.mubr.bf16.gmra.mrb[0].mxu0 %v378
        %v463 = vpop.f32.mrb[0].mxu0
        %v464 = vadd.f32 %v395, %v463
        %v465 = vpop.f32.mrb[0].mxu0
        %v466 = vpop.f32.mrb[0].mxu0
        %v467 = vadd.f32 %v395, %v466
        %v468 = vpop.f32.mrb[0].mxu0
        %469 = vmatprep.mubr.bf16.mxu0 0
        %470 = vmatmul.mubr.bf16.gmra.mrb[0].mxu0 %v379
        %v471 = vpop.f32.mrb[0].mxu0
        %v472 = vadd.f32 %v395, %v471
        %v473 = vpop.f32.mrb[0].mxu0
        %v474 = vpop.f32.mrb[0].mxu0
        %v475 = vadd.f32 %v395, %v474
        %v476 = vpop.f32.mrb[0].mxu0
        %477 = vmatprep.mubr.bf16.mxu0 0
        %478 = vmatmul.mubr.bf16.gmra.mrb[0].mxu0 %v380
        %v479 = vpop.f32.mrb[0].mxu0
        %v480 = vadd.f32 %v395, %v479
        %v481 = vpop.f32.mrb[0].mxu0
        %v482 = vpop.f32.mrb[0].mxu0
        %v483 = vadd.f32 %v395, %v482
        %v484 = vpop.f32.mrb[0].mxu0
        %485 = vmatprep.mubr.bf16.mxu0 0
        %486 = vmatmul.mubr.bf16.gmra.mrb[0].mxu0 %v381
        %v487 = vpop.f32.mrb[0].mxu0
        %v488 = vadd.f32 %v395, %v487
        %v489 = vpop.f32.mrb[0].mxu0
        %v490 = vpop.f32.mrb[0].mxu0
        %v491 = vadd.f32 %v395, %v490
        %v492 = vpop.f32.mrb[0].mxu0
        %493 = vdwg.mxu0
        %v494 = vmax.f32 %v432, 0.0
        %v495 = vmax.f32 %v435, 0.0
        %v496 = vmax.f32 %v440, 0.0
        %v497 = vmax.f32 %v443, 0.0
        %v498 = vmax.f32 %v448, 0.0
        %v499 = vmax.f32 %v451, 0.0
        %v500 = vmax.f32 %v456, 0.0
        %v501 = vmax.f32 %v459, 0.0
        %v502 = vmax.f32 %v464, 0.0
        %v503 = vmax.f32 %v467, 0.0
        %v504 = vmax.f32 %v472, 0.0
        %v505 = vmax.f32 %v475, 0.0
        %v506 = vmax.f32 %v480, 0.0
        %v507 = vmax.f32 %v483, 0.0
        %v508 = vmax.f32 %v488, 0.0
        %v509 = vmax.f32 %v491, 0.0
        %v510 = vpack.c.bf16 %v495, %v494
        %v511 = vpack.c.bf16 %v497, %v496
        %v512 = vpack.c.bf16 %v499, %v498
        %v513 = vpack.c.bf16 %v501, %v500
        %v514 = vpack.c.bf16 %v503, %v502
        %v515 = vpack.c.bf16 %v505, %v504
        %v516 = vpack.c.bf16 %v507, %v506
        %v517 = vpack.c.bf16 %v509, %v508
        %518 = vst [vmem:[#allocation3] sm:$0xff] %v510
        %519 = vst [vmem:[#allocation3 + $0x8] sm:$0xff] %v511
        %520 = vst [vmem:[#allocation3 + $0x10] sm:$0xff] %v512
        %521 = vst [vmem:[#allocation3 + $0x18] sm:$0xff] %v513
        %522 = vst [vmem:[#allocation3 + $0x20] sm:$0xff] %v514
        %523 = vst [vmem:[#allocation3 + $0x28] sm:$0xff] %v515
        %524 = vst [vmem:[#allocation3 + $0x30] sm:$0xff] %v516
        %525 = vst [vmem:[#allocation3 + $0x38] sm:$0xff] %v517
        %p526 = scmp.eq.s32.totalorder %s19, 1
        // Predicated region
        $region49: #{tpu_custom_call.1} parent=27 // pred_check
          %p527 = pneg %p526
        $region50: #{tpu_custom_call.1} parent=27 // pred_check_branch
          %529 = sbr.rel (%p527) target = $region52
        $region51: #{tpu_custom_call.1} parent=27 // pred_region
          %530 = vst [vmem:[#allocation8] sm:$0xff] %v494
          %531 = vst [vmem:[#allocation8 + $0x8] sm:$0xff] %v495
          %532 = vst [vmem:[#allocation8 + $0x10] sm:$0xff] %v496
          %533 = vst [vmem:[#allocation8 + $0x18] sm:$0xff] %v497
          %534 = vst [vmem:[#allocation8 + $0x20] sm:$0xff] %v498
          %535 = vst [vmem:[#allocation8 + $0x28] sm:$0xff] %v499
          %536 = vst [vmem:[#allocation8 + $0x30] sm:$0xff] %v500
          %537 = vst [vmem:[#allocation8 + $0x38] sm:$0xff] %v501
          %538 = vst [vmem:[#allocation8 + $0x40] sm:$0xff] %v502
          %539 = vst [vmem:[#allocation8 + $0x48] sm:$0xff] %v503
          %540 = vst [vmem:[#allocation8 + $0x50] sm:$0xff] %v504
          %541 = vst [vmem:[#allocation8 + $0x58] sm:$0xff] %v505
          %542 = vst [vmem:[#allocation8 + $0x60] sm:$0xff] %v506
          %543 = vst [vmem:[#allocation8 + $0x68] sm:$0xff] %v507
          %544 = vst [vmem:[#allocation8 + $0x70] sm:$0xff] %v508
          %545 = vst [vmem:[#allocation8 + $0x78] sm:$0xff] %v509
        $region52: #{tpu_custom_call.1} parent=27 // pred_fallthru
          _
        // Predicated region
        $region53: #{tpu_custom_call.1} parent=27 // pred_check
          %p546 = pneg %p84
        $region54: #{tpu_custom_call.1} parent=27 // pred_check_branch
          %548 = sbr.rel (%p546) target = $region56
        $region55: #{tpu_custom_call.1} parent=27 // pred_region
          %s550 = ssub.s32 2048, 2048
          %551 = vsyncadd [#allocation7], %s550
          %s552 = sshll.u32 [#allocation8], 4
          %s553 = int_to_ptr.vmem [resolvable:$true] %s552
          %558 = dma.vmem_to_hbm [thread:$0]  %s553, 2048, %s4, [#allocation7], 128, 128, 8
        $region56: #{tpu_custom_call.1} parent=27 // pred_fallthru
          _
        // Predicated region
        $region57: #{tpu_custom_call.1} parent=27 // pred_check
          %p559 = pneg %p84
        $region58: #{tpu_custom_call.1} parent=27 // pred_check_branch
          %561 = sbr.rel (%p559) target = $region60
        $region59: #{tpu_custom_call.1} parent=27 // pred_region
          %562 = dma.done [#allocation7], 2048
        $region60: #{tpu_custom_call.1} parent=27 // pred_fallthru
          _
      $region28: #{tpu_custom_call.1} parent=5 // pred_fallthru
        _
      %p563 = scmp.le.s32.totalorder 2, %s14
      // Predicated region
      $region61: #{tpu_custom_call.1} parent=5 // pred_check
        %p564 = pneg %p563
      $region62: #{tpu_custom_call.1} parent=5 // pred_check_branch
        %566 = sbr.rel (%p564) target = $region64
      $region63: #{tpu_custom_call.1} parent=5 // pred_region
        %s567 = ssub.s32 %s14, 2
      $region64: #{tpu_custom_call.1} parent=5 // pred_fallthru
        _
    $region6: #{tpu_custom_call.1} parent=1 // loop_footer
      %s18 = sadd.s32 1, %s14
    $region7: #{tpu_custom_call.1} parent=1 // loop_footer_branch
      %13 = sbr.rel target = $region3
    $region8: #{tpu_custom_call.1} parent=1 // loop_exit
      _
    %568 = vsyncpa [#allocation6], 1
    %s569 = scalar_lea.sflag [#allocation6], 1
    %570 = vsyncpa %s569, 1
    %571 = vsyncpa [#allocation7], 1
    %s572 = scalar_lea.sflag [#allocation7], 1
    %573 = vsyncpa %s572, 1
  %574 = vsyncmov [#allocation4]
  %s575 = vpop.sfrf %574
  %p576 = scmp.eq.s32.totalorder %s575, 0
  %p577 = pneg %p576
  %579 = shalt.err (%p577)
  %s580 = scalar_lea.sflag [#allocation4], 1
  %581 = vsyncmov %s580
  %s582 = vpop.sfrf %581
  %p583 = scmp.eq.s32.totalorder %s582, 0
  %p584 = pneg %p583
  %586 = shalt.err (%p584)

</llo_original>
